<compile_context>
chip_gen: v6e
topology: v6e:2x2x1
jax: 0.10.0
libtpu: 0.0.40
codegen_flags: <defaults>
</compile_context>

<pallas_src>
import functools

import jax
import jax.numpy as jnp
from jax.experimental import pallas as pl
from jax.experimental.pallas import tpu as pltpu


# ---------------------------------------------------------------------------
# Kernel body
# ---------------------------------------------------------------------------
def _rope_kernel(cos_ref, sin_ref, q_ref, k_ref, qo_ref, ko_ref, *,
                 head_dim, half, single_roll, head_block):
    cos = cos_ref[...]          # (tr, W)
    sin = sin_ref[...]          # (tr, W)  signed: [-sin | +sin] per head group
    W = cos.shape[-1]

    if single_roll:
        # pack == 1 (head_dim >= 128): W == head_dim so half == W - half and a
        # single XLU roll implements rotate_half's data movement.
        def rotate(x):
            return pltpu.roll(x, half, 1)
    else:
        # packed path: several sequence positions share one 128-lane row.
        # Select between the two rolls with a loop-invariant per-lane mask.
        lane = jax.lax.broadcasted_iota(jnp.int32, cos.shape, 1)
        first_half = (lane % head_dim) < half

        def rotate(x):
            to_lo = pltpu.roll(x, W - half, 1)   # x[i + half] -> lane i
            to_hi = pltpu.roll(x, half, 1)       # x[i - half] -> lane i
            return jnp.where(first_half, to_lo, to_hi)

    # Static unroll over the head block (HB <= 8); tables / mask are hoisted.
    for h in range(head_block):
        qh = q_ref[h]                             # (tr, W)
        kh = k_ref[h]
        qo_ref[h] = qh * cos + rotate(qh) * sin
        ko_ref[h] = kh * cos + rotate(kh) * sin


# ---------------------------------------------------------------------------
# cos / sin table construction (cached per shape/dtype — mirrors the module's
# _update_cos_sin_tables buffer cache)
# ---------------------------------------------------------------------------
_TABLE_CACHE = {}


def _rope_tables(seq_len, head_dim, base, pack, dtype):
    dtype = jnp.dtype(dtype)
    key = (int(seq_len), int(head_dim), int(base), int(pack), dtype.name)
    hit = _TABLE_CACHE.get(key)
    if hit is not None:
        return hit
    half = head_dim // 2
    # Same f32 expressions as the PyTorch/JAX reference (bitwise-identical
    # tables).  Only shape-derived python ints flow in, so these ops run
    # eagerly (concrete) even under jit and are safe to cache.
    inv_freq = 1.0 / (base ** (jnp.arange(0, head_dim, 2, dtype=jnp.float32)
                               / head_dim))
    t = jnp.arange(seq_len, dtype=jnp.float32)
    freqs = t[:, None] * inv_freq[None, :]               # (S, D/2)
    emb = jnp.concatenate([freqs, freqs], axis=-1)       # (S, D)
    cos = jnp.cos(emb)
    sin = jnp.sin(emb)
    # Fold rotate_half's sign into a single signed sin table.
    sin_signed = jnp.concatenate([-sin[:, :half], sin[:, half:]], axis=-1)
    R, W = seq_len // pack, pack * head_dim
    hit = (cos.astype(dtype).reshape(R, W),
           sin_signed.astype(dtype).reshape(R, W))
    _TABLE_CACHE[key] = hit
    return hit


def _largest_divisor_le(n, cap):
    for d in range(min(cap, n), 0, -1):
        if n % d == 0:
            return d
    return 1


# ---------------------------------------------------------------------------
# Wrapper
# ---------------------------------------------------------------------------
def llama_rotary_embedding(q, k, base: int = 10000, *,
                           max_row_tile: int = 2048,
                           vmem_budget_bytes: int = 20 * 1024 * 1024,
                           donate_qk: bool = False):
    """Applies LlamaRotaryEmbedding.forward semantics to q, k.

    q, k: (batch, num_heads, seq_len, head_dim) float arrays.
    Returns (q_embed, k_embed) with the same shapes/dtypes.
    """
    B, H, S, D = q.shape
    # TODO(synk): GQA (num_kv_heads != num_heads) would need a separate k head
    # axis in the grid; the reference module always passes matching shapes.
    assert k.shape == (B, H, S, D), "q and k must have identical shapes"
    assert D % 2 == 0
    half = D // 2

    # ---- lane-dense packing: make the last dim a multiple of 128 lanes ----
    pack = 1
    if D < 128 and 128 % D == 0:
        pack = 128 // D           # e.g. 2 seq positions per row for D=64
    # TODO(synk): D < 128 with 128 % D != 0 (e.g. 96) still lowers to narrow
    # (masked) stores; such head dims don't occur in Llama configs.
    W = pack * D                  # lane width of one row
    S_pad = pl.cdiv(S, pack) * pack
    if S_pad != S:                # pad so packing never falls back to W < 128
        padding = ((0, 0), (0, 0), (0, S_pad - S), (0, 0))
        q = jnp.pad(q, padding)
        k = jnp.pad(k, padding)
    R = S_pad // pack             # rows per (batch, head) slab

    cos_t, sin_t = _rope_tables(S_pad, D, base, pack, q.dtype)

    BH = B * H
    qf = q.reshape(BH, R, W)      # contiguous reshape: no data movement
    kf = k.reshape(BH, R, W)

    # ---- tiling: head blocking + row tiles sized from a VMEM byte budget ----
    itemsize = jnp.dtype(q.dtype).itemsize
    HB = _largest_divisor_le(BH, 8)              # heads per grid step
    n_bufs = 4 * HB + 2                          # q/k in+out blocks + 2 tables
    # double-buffered footprint ~= 2 * n_bufs * tr * W * itemsize
    tr_budget = max(vmem_budget_bytes // (2 * n_bufs * W * itemsize), 8)
    tr = min(R, max_row_tile, tr_budget)
    if tr < R:
        tr = max(8, (tr // 8) * 8)               # sublane-aligned row tile
    nrt = pl.cdiv(R, tr)
    # Keep >= 2 parallel grid steps when possible so both v7x TCs get work.
    if nrt * (BH // HB) < 2 and HB > 1:
        HB = _largest_divisor_le(BH, max(1, HB // 2))
        n_bufs = 4 * HB + 2
    nhb = BH // HB
    grid = (nrt, nhb)   # row-tile outer: table block index constant over heads

    table_spec = pl.BlockSpec((tr, W), lambda r, i: (r, 0))
    slab_spec = pl.BlockSpec((HB, tr, W), lambda r, i: (i, r, 0))

    kernel = functools.partial(_rope_kernel, head_dim=D, half=half,
                               single_roll=(pack == 1), head_block=HB)

    q_out, k_out = pl.pallas_call(
        kernel,
        out_shape=(
            jax.ShapeDtypeStruct((BH, R, W), q.dtype),
            jax.ShapeDtypeStruct((BH, R, W), k.dtype),
        ),
        grid=grid,
        in_specs=[table_spec, table_spec, slab_spec, slab_spec],
        out_specs=[slab_spec, slab_spec],
        compiler_params=pltpu.CompilerParams(
            dimension_semantics=("parallel", "parallel"),
            vmem_limit_bytes=32 * 1024 * 1024),
        input_output_aliases={2: 0, 3: 1} if donate_qk else {},
    )(cos_t, sin_t, qf, kf)

    q_out = q_out.reshape(B, H, S_pad, D)
    k_out = k_out.reshape(B, H, S_pad, D)
    if S_pad != S:
        q_out = q_out[:, :, :S, :]
        k_out = k_out[:, :, :S, :]
    return q_out, k_out


# ---------------------------------------------------------------------------
# Pure-JAX reference mirroring the PyTorch forward
# ---------------------------------------------------------------------------
def _reference(q, k, base: int = 10000):
    B, H, S, D = q.shape
    inv_freq = 1.0 / (base ** (jnp.arange(0, D, 2, dtype=jnp.float32) / D))
    t = jnp.arange(S, dtype=jnp.float32)
    freqs = t[:, None] * inv_freq[None, :]
    emb = jnp.concatenate([freqs, freqs], axis=-1)
    cos = jnp.cos(emb)[None, None, :, :]
    sin = jnp.sin(emb)[None, None, :, :]

    def rotate_half(x):
        x1, x2 = x[..., : D // 2], x[..., D // 2:]
        return jnp.concatenate([-x2, x1], axis=-1)

    return q * cos + rotate_half(q) * sin, k * cos + rotate_half(k) * sin


if __name__ == "__main__":
    def check(B, H, S, D, seed, **kw):
        kq, kk = jax.random.split(jax.random.PRNGKey(seed))
        q = jax.random.normal(kq, (B, H, S, D), dtype=jnp.float32)
        k = jax.random.normal(kk, (B, H, S, D), dtype=jnp.float32)
        q_emb, k_emb = llama_rotary_embedding(q, k, **kw)
        jax.block_until_ready((q_emb, k_emb))
        q_ref, k_ref = _reference(q, k)
        assert jnp.allclose(q_emb, q_ref, atol=1e-5, rtol=1e-5)
        assert jnp.allclose(k_emb, k_ref, atol=1e-5, rtol=1e-5)

    # Primary: module default head_dim=64, small shapes (packed two-roll path,
    # head-blocked grid).
    check(2, 4, 8, 64, seed=0)
    # Multi-row-tile grid path (seq tiling exercised via a small tile cap).
    check(1, 2, 256, 64, seed=1, max_row_tile=32)
    # Single-roll / single-table path for head_dim >= 128 (Llama default 128).
    check(1, 2, 16, 128, seed=2)
    # Odd seq_len -> lane-dense padding fallback path.
    check(1, 1, 7, 64, seed=3)

    print("KERNEL_OK")
</pallas_src>

<mosaic_0001>
module attributes {stable_mosaic.version = 11 : i64} {
  func.func @_rope_kernel(%arg0: i32, %arg1: i32, %arg2: memref<4x128xf32, #tpu.memory_space<vmem>>, %arg3: memref<4x128xf32, #tpu.memory_space<vmem>>, %arg4: memref<4x4x128xf32, #tpu.memory_space<vmem>>, %arg5: memref<4x4x128xf32, #tpu.memory_space<vmem>>, %arg6: memref<4x4x128xf32, #tpu.memory_space<vmem>>, %arg7: memref<4x4x128xf32, #tpu.memory_space<vmem>>) attributes {dimension_semantics = [#tpu.dimension_semantics<parallel>, #tpu.dimension_semantics<parallel>], iteration_bounds = array<i64: 1, 2>, scalar_prefetch = 0 : i64, scratch_operands = 0 : i64, tpu.core_type = #tpu.core_type<tc>, window_params = [{transform_indices = @transform_0, window_bounds = array<i64: 4, 128>}, {transform_indices = @transform_1, window_bounds = array<i64: 4, 128>}, {transform_indices = @transform_2, window_bounds = array<i64: 4, 4, 128>}, {transform_indices = @transform_3, window_bounds = array<i64: 4, 4, 128>}, {transform_indices = @transform_4, window_bounds = array<i64: 4, 4, 128>}, {transform_indices = @transform_5, window_bounds = array<i64: 4, 4, 128>}]} {
    %c0 = arith.constant 0 : index
    %c0_0 = arith.constant 0 : index
    %0 = vector.load %arg2[%c0, %c0_0] : memref<4x128xf32, #tpu.memory_space<vmem>>, vector<4x128xf32>
    %c0_1 = arith.constant 0 : index
    %c0_2 = arith.constant 0 : index
    %1 = vector.load %arg3[%c0_1, %c0_2] : memref<4x128xf32, #tpu.memory_space<vmem>>, vector<4x128xf32>
    %2 = tpu.iota {dimensions = array<i32: 1>} : vector<4x128xi32>
    %c64_i32 = arith.constant 64 : i32
    %c0_i32 = arith.constant 0 : i32
    %3 = arith.cmpi eq, %c64_i32, %c0_i32 : i32
    %c1_i32 = arith.constant 1 : i32
    %4 = arith.select %3, %c1_i32, %c64_i32 : i32
    %5 = vector.broadcast %4 : i32 to vector<4x128xi32>
    %6 = arith.remsi %2, %5 : vector<4x128xi32>
    %c0_i32_3 = arith.constant 0 : i32
    %7 = vector.broadcast %c0_i32_3 : i32 to vector<4x128xi32>
    %8 = arith.cmpi ne, %6, %7 : vector<4x128xi32>
    %c0_i32_4 = arith.constant 0 : i32
    %9 = vector.broadcast %c0_i32_4 : i32 to vector<4x128xi32>
    %10 = arith.cmpi slt, %6, %9 : vector<4x128xi32>
    %c0_i32_5 = arith.constant 0 : i32
    %11 = arith.cmpi slt, %4, %c0_i32_5 : i32
    %12 = vector.broadcast %11 : i1 to vector<4x128xi1>
    %13 = vector.broadcast %12 : vector<4x128xi1> to vector<4x128xi1>
    %14 = arith.xori %10, %13 : vector<4x128xi1>
    %15 = arith.andi %14, %8 : vector<4x128xi1>
    %16 = vector.broadcast %4 : i32 to vector<4x128xi32>
    %17 = arith.addi %6, %16 : vector<4x128xi32>
    %18 = arith.select %15, %17, %6 : vector<4x128xi1>, vector<4x128xi32>
    %c32_i32 = arith.constant 32 : i32
    %19 = vector.broadcast %c32_i32 : i32 to vector<4x128xi32>
    %20 = arith.cmpi slt, %18, %19 : vector<4x128xi32>
    %c0_6 = arith.constant 0 : index
    %c0_7 = arith.constant 0 : index
    %c0_8 = arith.constant 0 : index
    %21 = vector.load %arg4[%c0_6, %c0_7, %c0_8] : memref<4x4x128xf32, #tpu.memory_space<vmem>>, vector<1x4x128xf32>
    %22 = vector.shape_cast %21 : vector<1x4x128xf32> to vector<4x128xf32>
    %c0_9 = arith.constant 0 : index
    %c0_10 = arith.constant 0 : index
    %c0_11 = arith.constant 0 : index
    %23 = vector.load %arg5[%c0_9, %c0_10, %c0_11] : memref<4x4x128xf32, #tpu.memory_space<vmem>>, vector<1x4x128xf32>
    %24 = vector.shape_cast %23 : vector<1x4x128xf32> to vector<4x128xf32>
    %25 = arith.mulf %22, %0 : vector<4x128xf32>
    %c96_i32 = arith.constant 96 : i32
    %26 = tpu.dynamic_rotate %22 by %c96_i32 dim 1 : vector<4x128xf32>, i32 -> vector<4x128xf32>
    %c32_i32_12 = arith.constant 32 : i32
    %27 = tpu.dynamic_rotate %22 by %c32_i32_12 dim 1 : vector<4x128xf32>, i32 -> vector<4x128xf32>
    %28 = arith.select %20, %26, %27 : vector<4x128xi1>, vector<4x128xf32>
    %29 = arith.mulf %28, %1 : vector<4x128xf32>
    %30 = arith.addf %25, %29 : vector<4x128xf32>
    %c0_13 = arith.constant 0 : index
    %c0_14 = arith.constant 0 : index
    %c0_15 = arith.constant 0 : index
    %31 = vector.load %arg6[%c0_13, %c0_14, %c0_15] : memref<4x4x128xf32, #tpu.memory_space<vmem>>, vector<1x4x128xf32>
    %32 = vector.shape_cast %31 : vector<1x4x128xf32> to vector<4x128xf32>
    %33 = vector.shape_cast %30 : vector<4x128xf32> to vector<1x4x128xf32>
    tpu.vector_store %arg6[%c0_13, %c0_14, %c0_15], %33 {strides = array<i32>} : memref<4x4x128xf32, #tpu.memory_space<vmem>>, vector<1x4x128xf32>,
    %34 = arith.mulf %24, %0 : vector<4x128xf32>
    %c96_i32_16 = arith.constant 96 : i32
    %35 = tpu.dynamic_rotate %24 by %c96_i32_16 dim 1 : vector<4x128xf32>, i32 -> vector<4x128xf32>
    %c32_i32_17 = arith.constant 32 : i32
    %36 = tpu.dynamic_rotate %24 by %c32_i32_17 dim 1 : vector<4x128xf32>, i32 -> vector<4x128xf32>
    %37 = arith.select %20, %35, %36 : vector<4x128xi1>, vector<4x128xf32>
    %38 = arith.mulf %37, %1 : vector<4x128xf32>
    %39 = arith.addf %34, %38 : vector<4x128xf32>
    %c0_18 = arith.constant 0 : index
    %c0_19 = arith.constant 0 : index
    %c0_20 = arith.constant 0 : index
    %40 = vector.load %arg7[%c0_18, %c0_19, %c0_20] : memref<4x4x128xf32, #tpu.memory_space<vmem>>, vector<1x4x128xf32>
    %41 = vector.shape_cast %40 : vector<1x4x128xf32> to vector<4x128xf32>
    %42 = vector.shape_cast %39 : vector<4x128xf32> to vector<1x4x128xf32>
    tpu.vector_store %arg7[%c0_18, %c0_19, %c0_20], %42 {strides = array<i32>} : memref<4x4x128xf32, #tpu.memory_space<vmem>>, vector<1x4x128xf32>,
    %c1 = arith.constant 1 : index
    %c0_21 = arith.constant 0 : index
    %c0_22 = arith.constant 0 : index
    %43 = vector.load %arg4[%c1, %c0_21, %c0_22] : memref<4x4x128xf32, #tpu.memory_space<vmem>>, vector<1x4x128xf32>
    %44 = vector.shape_cast %43 : vector<1x4x128xf32> to vector<4x128xf32>
    %c1_23 = arith.constant 1 : index
    %c0_24 = arith.constant 0 : index
    %c0_25 = arith.constant 0 : index
    %45 = vector.load %arg5[%c1_23, %c0_24, %c0_25] : memref<4x4x128xf32, #tpu.memory_space<vmem>>, vector<1x4x128xf32>
    %46 = vector.shape_cast %45 : vector<1x4x128xf32> to vector<4x128xf32>
    %47 = arith.mulf %44, %0 : vector<4x128xf32>
    %c96_i32_26 = arith.constant 96 : i32
    %48 = tpu.dynamic_rotate %44 by %c96_i32_26 dim 1 : vector<4x128xf32>, i32 -> vector<4x128xf32>
    %c32_i32_27 = arith.constant 32 : i32
    %49 = tpu.dynamic_rotate %44 by %c32_i32_27 dim 1 : vector<4x128xf32>, i32 -> vector<4x128xf32>
    %50 = arith.select %20, %48, %49 : vector<4x128xi1>, vector<4x128xf32>
    %51 = arith.mulf %50, %1 : vector<4x128xf32>
    %52 = arith.addf %47, %51 : vector<4x128xf32>
    %c1_28 = arith.constant 1 : index
    %c0_29 = arith.constant 0 : index
    %c0_30 = arith.constant 0 : index
    %53 = vector.load %arg6[%c1_28, %c0_29, %c0_30] : memref<4x4x128xf32, #tpu.memory_space<vmem>>, vector<1x4x128xf32>
    %54 = vector.shape_cast %53 : vector<1x4x128xf32> to vector<4x128xf32>
    %55 = vector.shape_cast %52 : vector<4x128xf32> to vector<1x4x128xf32>
    tpu.vector_store %arg6[%c1_28, %c0_29, %c0_30], %55 {strides = array<i32>} : memref<4x4x128xf32, #tpu.memory_space<vmem>>, vector<1x4x128xf32>,
    %56 = arith.mulf %46, %0 : vector<4x128xf32>
    %c96_i32_31 = arith.constant 96 : i32
    %57 = tpu.dynamic_rotate %46 by %c96_i32_31 dim 1 : vector<4x128xf32>, i32 -> vector<4x128xf32>
    %c32_i32_32 = arith.constant 32 : i32
    %58 = tpu.dynamic_rotate %46 by %c32_i32_32 dim 1 : vector<4x128xf32>, i32 -> vector<4x128xf32>
    %59 = arith.select %20, %57, %58 : vector<4x128xi1>, vector<4x128xf32>
    %60 = arith.mulf %59, %1 : vector<4x128xf32>
    %61 = arith.addf %56, %60 : vector<4x128xf32>
    %c1_33 = arith.constant 1 : index
    %c0_34 = arith.constant 0 : index
    %c0_35 = arith.constant 0 : index
    %62 = vector.load %arg7[%c1_33, %c0_34, %c0_35] : memref<4x4x128xf32, #tpu.memory_space<vmem>>, vector<1x4x128xf32>
    %63 = vector.shape_cast %62 : vector<1x4x128xf32> to vector<4x128xf32>
    %64 = vector.shape_cast %61 : vector<4x128xf32> to vector<1x4x128xf32>
    tpu.vector_store %arg7[%c1_33, %c0_34, %c0_35], %64 {strides = array<i32>} : memref<4x4x128xf32, #tpu.memory_space<vmem>>, vector<1x4x128xf32>,
    %c2 = arith.constant 2 : index
    %c0_36 = arith.constant 0 : index
    %c0_37 = arith.constant 0 : index
    %65 = vector.load %arg4[%c2, %c0_36, %c0_37] : memref<4x4x128xf32, #tpu.memory_space<vmem>>, vector<1x4x128xf32>
    %66 = vector.shape_cast %65 : vector<1x4x128xf32> to vector<4x128xf32>
    %c2_38 = arith.constant 2 : index
    %c0_39 = arith.constant 0 : index
    %c0_40 = arith.constant 0 : index
    %67 = vector.load %arg5[%c2_38, %c0_39, %c0_40] : memref<4x4x128xf32, #tpu.memory_space<vmem>>, vector<1x4x128xf32>
    %68 = vector.shape_cast %67 : vector<1x4x128xf32> to vector<4x128xf32>
    %69 = arith.mulf %66, %0 : vector<4x128xf32>
    %c96_i32_41 = arith.constant 96 : i32
    %70 = tpu.dynamic_rotate %66 by %c96_i32_41 dim 1 : vector<4x128xf32>, i32 -> vector<4x128xf32>
    %c32_i32_42 = arith.constant 32 : i32
    %71 = tpu.dynamic_rotate %66 by %c32_i32_42 dim 1 : vector<4x128xf32>, i32 -> vector<4x128xf32>
    %72 = arith.select %20, %70, %71 : vector<4x128xi1>, vector<4x128xf32>
    %73 = arith.mulf %72, %1 : vector<4x128xf32>
    %74 = arith.addf %69, %73 : vector<4x128xf32>
    %c2_43 = arith.constant 2 : index
    %c0_44 = arith.constant 0 : index
    %c0_45 = arith.constant 0 : index
    %75 = vector.load %arg6[%c2_43, %c0_44, %c0_45] : memref<4x4x128xf32, #tpu.memory_space<vmem>>, vector<1x4x128xf32>
    %76 = vector.shape_cast %75 : vector<1x4x128xf32> to vector<4x128xf32>
    %77 = vector.shape_cast %74 : vector<4x128xf32> to vector<1x4x128xf32>
    tpu.vector_store %arg6[%c2_43, %c0_44, %c0_45], %77 {strides = array<i32>} : memref<4x4x128xf32, #tpu.memory_space<vmem>>, vector<1x4x128xf32>,
    %78 = arith.mulf %68, %0 : vector<4x128xf32>
    %c96_i32_46 = arith.constant 96 : i32
    %79 = tpu.dynamic_rotate %68 by %c96_i32_46 dim 1 : vector<4x128xf32>, i32 -> vector<4x128xf32>
    %c32_i32_47 = arith.constant 32 : i32
    %80 = tpu.dynamic_rotate %68 by %c32_i32_47 dim 1 : vector<4x128xf32>, i32 -> vector<4x128xf32>
    %81 = arith.select %20, %79, %80 : vector<4x128xi1>, vector<4x128xf32>
    %82 = arith.mulf %81, %1 : vector<4x128xf32>
    %83 = arith.addf %78, %82 : vector<4x128xf32>
    %c2_48 = arith.constant 2 : index
    %c0_49 = arith.constant 0 : index
    %c0_50 = arith.constant 0 : index
    %84 = vector.load %arg7[%c2_48, %c0_49, %c0_50] : memref<4x4x128xf32, #tpu.memory_space<vmem>>, vector<1x4x128xf32>
    %85 = vector.shape_cast %84 : vector<1x4x128xf32> to vector<4x128xf32>
    %86 = vector.shape_cast %83 : vector<4x128xf32> to vector<1x4x128xf32>
    tpu.vector_store %arg7[%c2_48, %c0_49, %c0_50], %86 {strides = array<i32>} : memref<4x4x128xf32, #tpu.memory_space<vmem>>, vector<1x4x128xf32>,
    %c3 = arith.constant 3 : index
    %c0_51 = arith.constant 0 : index
    %c0_52 = arith.constant 0 : index
    %87 = vector.load %arg4[%c3, %c0_51, %c0_52] : memref<4x4x128xf32, #tpu.memory_space<vmem>>, vector<1x4x128xf32>
    %88 = vector.shape_cast %87 : vector<1x4x128xf32> to vector<4x128xf32>
    %c3_53 = arith.constant 3 : index
    %c0_54 = arith.constant 0 : index
    %c0_55 = arith.constant 0 : index
    %89 = vector.load %arg5[%c3_53, %c0_54, %c0_55] : memref<4x4x128xf32, #tpu.memory_space<vmem>>, vector<1x4x128xf32>
    %90 = vector.shape_cast %89 : vector<1x4x128xf32> to vector<4x128xf32>
    %91 = arith.mulf %88, %0 : vector<4x128xf32>
    %c96_i32_56 = arith.constant 96 : i32
    %92 = tpu.dynamic_rotate %88 by %c96_i32_56 dim 1 : vector<4x128xf32>, i32 -> vector<4x128xf32>
    %c32_i32_57 = arith.constant 32 : i32
    %93 = tpu.dynamic_rotate %88 by %c32_i32_57 dim 1 : vector<4x128xf32>, i32 -> vector<4x128xf32>
    %94 = arith.select %20, %92, %93 : vector<4x128xi1>, vector<4x128xf32>
    %95 = arith.mulf %94, %1 : vector<4x128xf32>
    %96 = arith.addf %91, %95 : vector<4x128xf32>
    %c3_58 = arith.constant 3 : index
    %c0_59 = arith.constant 0 : index
    %c0_60 = arith.constant 0 : index
    %97 = vector.load %arg6[%c3_58, %c0_59, %c0_60] : memref<4x4x128xf32, #tpu.memory_space<vmem>>, vector<1x4x128xf32>
    %98 = vector.shape_cast %97 : vector<1x4x128xf32> to vector<4x128xf32>
    %99 = vector.shape_cast %96 : vector<4x128xf32> to vector<1x4x128xf32>
    tpu.vector_store %arg6[%c3_58, %c0_59, %c0_60], %99 {strides = array<i32>} : memref<4x4x128xf32, #tpu.memory_space<vmem>>, vector<1x4x128xf32>,
    %100 = arith.mulf %90, %0 : vector<4x128xf32>
    %c96_i32_61 = arith.constant 96 : i32
    %101 = tpu.dynamic_rotate %90 by %c96_i32_61 dim 1 : vector<4x128xf32>, i32 -> vector<4x128xf32>
    %c32_i32_62 = arith.constant 32 : i32
    %102 = tpu.dynamic_rotate %90 by %c32_i32_62 dim 1 : vector<4x128xf32>, i32 -> vector<4x128xf32>
    %103 = arith.select %20, %101, %102 : vector<4x128xi1>, vector<4x128xf32>
    %104 = arith.mulf %103, %1 : vector<4x128xf32>
    %105 = arith.addf %100, %104 : vector<4x128xf32>
    %c3_63 = arith.constant 3 : index
    %c0_64 = arith.constant 0 : index
    %c0_65 = arith.constant 0 : index
    %106 = vector.load %arg7[%c3_63, %c0_64, %c0_65] : memref<4x4x128xf32, #tpu.memory_space<vmem>>, vector<1x4x128xf32>
    %107 = vector.shape_cast %106 : vector<1x4x128xf32> to vector<4x128xf32>
    %108 = vector.shape_cast %105 : vector<4x128xf32> to vector<1x4x128xf32>
    tpu.vector_store %arg7[%c3_63, %c0_64, %c0_65], %108 {strides = array<i32>} : memref<4x4x128xf32, #tpu.memory_space<vmem>>, vector<1x4x128xf32>,
    return
  }
  func.func @transform_0(%arg0: i32, %arg1: i32) -> (i32, i32) {
    %c0_i32 = arith.constant 0 : i32
    %c0_i32_0 = arith.constant 0 : i32
    return %arg0, %c0_i32 : i32, i32
  }
  func.func @transform_1(%arg0: i32, %arg1: i32) -> (i32, i32) {
    %c0_i32 = arith.constant 0 : i32
    %c0_i32_0 = arith.constant 0 : i32
    return %arg0, %c0_i32 : i32, i32
  }
  func.func @transform_2(%arg0: i32, %arg1: i32) -> (i32, i32, i32) {
    %c0_i32 = arith.constant 0 : i32
    %c0_i32_0 = arith.constant 0 : i32
    return %arg1, %arg0, %c0_i32 : i32, i32, i32
  }
  func.func @transform_3(%arg0: i32, %arg1: i32) -> (i32, i32, i32) {
    %c0_i32 = arith.constant 0 : i32
    %c0_i32_0 = arith.constant 0 : i32
    return %arg1, %arg0, %c0_i32 : i32, i32, i32
  }
  func.func @transform_4(%arg0: i32, %arg1: i32) -> (i32, i32, i32) {
    %c0_i32 = arith.constant 0 : i32
    %c0_i32_0 = arith.constant 0 : i32
    return %arg1, %arg0, %c0_i32 : i32, i32, i32
  }
  func.func @transform_5(%arg0: i32, %arg1: i32) -> (i32, i32, i32) {
    %c0_i32 = arith.constant 0 : i32
    %c0_i32_0 = arith.constant 0 : i32
    return %arg1, %arg0, %c0_i32 : i32, i32, i32
  }
}

</mosaic_0001>

<llo_original>
// kernel: tpu_custom_call.1
$region0: #{tpu_custom_call.1}
  #allocation0 [shape = 'u32[]', space=smem, size = 0x4, offset = 0x4, fixed_abs, tag = 'smem constant byte address 0x4 - core index']
  #allocation1 [shape = 'u32[144,128]{1,0:T(1,128)}', space=vmem, size = 0x12000, scoped, tag = 'internal scratch']
  %s0 = inlined_call_operand.hbm [shape: f32[4,128], index: 0, kind: input, shape index: {}]
  %s1 = inlined_call_operand.hbm [shape: f32[4,128], index: 1, kind: input, shape index: {}]
  %s2 = inlined_call_operand.hbm [shape: f32[8,4,128], index: 2, kind: input, shape index: {}]
  %s3 = inlined_call_operand.hbm [shape: f32[8,4,128], index: 3, kind: input, shape index: {}]
  %s4 = inlined_call_operand.hbm [shape: f32[8,4,128], index: 4, kind: output, shape index: {0}]
  %s5 = inlined_call_operand.hbm [shape: f32[8,4,128], index: 5, kind: output, shape index: {1}]
  %6 = xla_tuple %s4, %s5
  %s7 = sld [smem:[#allocation0]]
  $region73: #{tpu_custom_call.1} parent=0
    _
  %s9 = ssub.s32 1, %s7
  %s10 = scalar_select 0, %s9, %s7
  $region1: #{tpu_custom_call.1} parent=0
    #allocation2 [shape = 'u8[2048]{0}', space=vmem, size = 0x800, scoped, tag = 'input window, operand 0, single buffered']
    #allocation3 [shape = 's32[2]{0}', space=sflag, size = 0x8, scoped, tag = 'scoped memory for tpu_custom_call.1']
    #allocation4 [shape = 's32[2]{0}', space=sflag, size = 0x8, scoped, tag = 'scoped memory for tpu_custom_call.1']
    #allocation5 [shape = 'u8[2048]{0}', space=vmem, size = 0x800, scoped, tag = 'input window, operand 1, single buffered']
    #allocation6 [shape = 's32[1]{0}', space=sflag, size = 0x4, scoped, tag = 'scoped memory for tpu_custom_call.1']
    #allocation7 [shape = 'u8[16384]{0}', space=vmem, size = 0x4000, scoped, tag = 'input window, operand 2']
    #allocation8 [shape = 'u8[16384]{0}', space=vmem, size = 0x4000, scoped, tag = 'input window, operand 3']
    #allocation9 [shape = 'u8[16384]{0}', space=vmem, size = 0x4000, scoped, tag = 'output window, operand 0']
    #allocation10 [shape = 'u8[16384]{0}', space=vmem, size = 0x4000, scoped, tag = 'output window, operand 1']
    #allocation11 [shape = 's32[2]{0}', space=sflag, size = 0x8, scoped, tag = 'scoped memory for tpu_custom_call.1']
    %11 = vsyncpa [#allocation3], 0
    %12 = vsyncpa [#allocation6], 0
    %13 = vsyncpa [#allocation4], 0
    %s14 = scalar_lea.sflag [#allocation4], 1
    %15 = vsyncpa %s14, 0
    %16 = vsyncpa [#allocation11], 0
    %s17 = scalar_lea.sflag [#allocation11], 1
    %18 = vsyncpa %s17, 0
    loop: start=0, step=1, limit=4
    $region2: #{tpu_custom_call.1} parent=1 // loop_pre_header
      _
    $region3: #{tpu_custom_call.1} parent=1 // loop_header
      %s20 = sphi 0, %s24
      %p21 = scmp.ge.s32.totalorder %s20, 4
      %s27 = sphi 0, %s39
      %s28 = sphi 0, %s35
      %s29 = sphi 0, %s27
      %s30 = sphi 0, %s28
      %s31 = sphi 0, %s29
      %s32 = sphi 0, %s30
      %s42 = sphi 0, %s44
      %s45 = sphi 0, %s42
      %s46 = sphi 0, %s45
      %s62 = sphi 0, %s46
      %s68 = sphi 0, %s70
      %s71 = sphi 0, %s68
      %s72 = sphi 0, %s71
      %s88 = sphi 0, %s72
      %s96 = sphi 0, %s98
      %s99 = sphi 0, %s96
      %s100 = sphi 0, %s99
      %s116 = sphi 0, %s100
      %s124 = sphi 0, %s126
      %s127 = sphi 0, %s124
      %s128 = sphi 0, %s127
      %s144 = sphi 0, %s128
      %s152 = sphi 0, %s154
      %s155 = sphi 0, %s152
      %s156 = sphi 0, %s155
      %s172 = sphi 0, %s156
      %s180 = sphi 0, %s182
      %s183 = sphi 0, %s180
      %s184 = sphi 0, %s183
      %s200 = sphi 0, %s184
    $region4: #{tpu_custom_call.1} parent=1 // loop_header_branch
      %23 = sbr.rel (%p21) target = $region8
    $region5: #{tpu_custom_call.1} parent=1 // loop_body
      %s25 = ssub.s32 %s20, 1
      %s26 = ssub.s32 %s20, 2
      %s33 = sadd.s32 1, %s28
      %p34 = scmp.ge.s32.totalorder %s33, 2
      %s35 = scalar_select %p34, 0, %s33
      %s36 = sadd.s32 1, %s27
      %s37 = scalar_select %p34, %s36, %s27
      %p38 = scmp.ge.s32.totalorder %s37, 1
      %s39 = scalar_select %p38, 0, %s37
      %s40 = ssub.s32 %s27, %s39
      %p41 = scmp.eq.s32.totalorder %s40, 0
      %s43 = sadd.s32 %s42, 1
      %s44 = scalar_select %p41, %s42, %s43
      %p47 = pneg %p41
      %p48 = scmp.eq.s32.totalorder %s20, 1
      %p49 = por %p47, %p48
      %p50 = scmp.ne.s32.totalorder %s42, %s45
      %p51 = scmp.eq.s32.totalorder %s20, 0
      %p52 = por %p50, %p51
      %p53 = scmp.ne.s32.totalorder %s42, %s45
      %p54 = scmp.eq.s32.totalorder %s25, 1
      %p55 = por %p53, %p54
      %p56 = scmp.ne.s32.totalorder %s45, %s46
      %p57 = scmp.eq.s32.totalorder %s25, 0
      %p58 = por %p56, %p57
      %p59 = scmp.ne.s32.totalorder %s45, %s46
      %p60 = scmp.eq.s32.totalorder %s26, 1
      %p61 = por %p59, %p60
      %p63 = scmp.ne.s32.totalorder %s46, %s62
      %p64 = scmp.eq.s32.totalorder %s26, 0
      %p65 = por %p63, %p64
      %s66 = ssub.s32 %s27, %s39
      %p67 = scmp.eq.s32.totalorder %s66, 0
      %s69 = sadd.s32 %s68, 1
      %s70 = scalar_select %p67, %s68, %s69
      %p73 = pneg %p67
      %p74 = scmp.eq.s32.totalorder %s20, 1
      %p75 = por %p73, %p74
      %p76 = scmp.ne.s32.totalorder %s68, %s71
      %p77 = scmp.eq.s32.totalorder %s20, 0
      %p78 = por %p76, %p77
      %p79 = scmp.ne.s32.totalorder %s68, %s71
      %p80 = scmp.eq.s32.totalorder %s25, 1
      %p81 = por %p79, %p80
      %p82 = scmp.ne.s32.totalorder %s71, %s72
      %p83 = scmp.eq.s32.totalorder %s25, 0
      %p84 = por %p82, %p83
      %p85 = scmp.ne.s32.totalorder %s71, %s72
      %p86 = scmp.eq.s32.totalorder %s26, 1
      %p87 = por %p85, %p86
      %p89 = scmp.ne.s32.totalorder %s72, %s88
      %p90 = scmp.eq.s32.totalorder %s26, 0
      %p91 = por %p89, %p90
      %s92 = ssub.s32 %s28, %s35
      %s93 = ssub.s32 %s27, %s39
      %s94 = sor.u32 %s92, %s93
      %p95 = scmp.eq.s32.totalorder %s94, 0
      %s97 = sadd.s32 %s96, 1
      %s98 = scalar_select %p95, %s96, %s97
      %p101 = pneg %p95
      %p102 = scmp.eq.s32.totalorder %s20, 1
      %p103 = por %p101, %p102
      %p104 = scmp.ne.s32.totalorder %s96, %s99
      %p105 = scmp.eq.s32.totalorder %s20, 0
      %p106 = por %p104, %p105
      %p107 = scmp.ne.s32.totalorder %s96, %s99
      %p108 = scmp.eq.s32.totalorder %s25, 1
      %p109 = por %p107, %p108
      %p110 = scmp.ne.s32.totalorder %s99, %s100
      %p111 = scmp.eq.s32.totalorder %s25, 0
      %p112 = por %p110, %p111
      %p113 = scmp.ne.s32.totalorder %s99, %s100
      %p114 = scmp.eq.s32.totalorder %s26, 1
      %p115 = por %p113, %p114
      %p117 = scmp.ne.s32.totalorder %s100, %s116
      %p118 = scmp.eq.s32.totalorder %s26, 0
      %p119 = por %p117, %p118
      %s120 = ssub.s32 %s28, %s35
      %s121 = ssub.s32 %s27, %s39
      %s122 = sor.u32 %s120, %s121
      %p123 = scmp.eq.s32.totalorder %s122, 0
      %s125 = sadd.s32 %s124, 1
      %s126 = scalar_select %p123, %s124, %s125
      %p129 = pneg %p123
      %p130 = scmp.eq.s32.totalorder %s20, 1
      %p131 = por %p129, %p130
      %p132 = scmp.ne.s32.totalorder %s124, %s127
      %p133 = scmp.eq.s32.totalorder %s20, 0
      %p134 = por %p132, %p133
      %p135 = scmp.ne.s32.totalorder %s124, %s127
      %p136 = scmp.eq.s32.totalorder %s25, 1
      %p137 = por %p135, %p136
      %p138 = scmp.ne.s32.totalorder %s127, %s128
      %p139 = scmp.eq.s32.totalorder %s25, 0
      %p140 = por %p138, %p139
      %p141 = scmp.ne.s32.totalorder %s127, %s128
      %p142 = scmp.eq.s32.totalorder %s26, 1
      %p143 = por %p141, %p142
      %p145 = scmp.ne.s32.totalorder %s128, %s144
      %p146 = scmp.eq.s32.totalorder %s26, 0
      %p147 = por %p145, %p146
      %s148 = ssub.s32 %s28, %s35
      %s149 = ssub.s32 %s27, %s39
      %s150 = sor.u32 %s148, %s149
      %p151 = scmp.eq.s32.totalorder %s150, 0
      %s153 = sadd.s32 %s152, 1
      %s154 = scalar_select %p151, %s152, %s153
      %p157 = pneg %p151
      %p158 = scmp.eq.s32.totalorder %s20, 1
      %p159 = por %p157, %p158
      %p160 = scmp.ne.s32.totalorder %s152, %s155
      %p161 = scmp.eq.s32.totalorder %s20, 0
      %p162 = por %p160, %p161
      %p163 = scmp.ne.s32.totalorder %s152, %s155
      %p164 = scmp.eq.s32.totalorder %s25, 1
      %p165 = por %p163, %p164
      %p166 = scmp.ne.s32.totalorder %s155, %s156
      %p167 = scmp.eq.s32.totalorder %s25, 0
      %p168 = por %p166, %p167
      %p169 = scmp.ne.s32.totalorder %s155, %s156
      %p170 = scmp.eq.s32.totalorder %s26, 1
      %p171 = por %p169, %p170
      %p173 = scmp.ne.s32.totalorder %s156, %s172
      %p174 = scmp.eq.s32.totalorder %s26, 0
      %p175 = por %p173, %p174
      %s176 = ssub.s32 %s28, %s35
      %s177 = ssub.s32 %s27, %s39
      %s178 = sor.u32 %s176, %s177
      %p179 = scmp.eq.s32.totalorder %s178, 0
      %s181 = sadd.s32 %s180, 1
      %s182 = scalar_select %p179, %s180, %s181
      %p185 = pneg %p179
      %p186 = scmp.eq.s32.totalorder %s20, 1
      %p187 = por %p185, %p186
      %p188 = scmp.ne.s32.totalorder %s180, %s183
      %p189 = scmp.eq.s32.totalorder %s20, 0
      %p190 = por %p188, %p189
      %p191 = scmp.ne.s32.totalorder %s180, %s183
      %p192 = scmp.eq.s32.totalorder %s25, 1
      %p193 = por %p191, %p192
      %p194 = scmp.ne.s32.totalorder %s183, %s184
      %p195 = scmp.eq.s32.totalorder %s25, 0
      %p196 = por %p194, %p195
      %p197 = scmp.ne.s32.totalorder %s183, %s184
      %p198 = scmp.eq.s32.totalorder %s26, 1
      %p199 = por %p197, %p198
      %p201 = scmp.ne.s32.totalorder %s184, %s200
      %p202 = scmp.eq.s32.totalorder %s26, 0
      %p203 = por %p201, %p202
      %p204 = scmp.le.s32.totalorder 1, %s20
      %p205 = scmp.lt.s32.totalorder %s20, 3
      %p206 = pnand %p204, %p205
      %p207 = pneg %p206
      // Predicated region
      $region9: #{tpu_custom_call.1} parent=5 // pred_check
        _
      $region10: #{tpu_custom_call.1} parent=5 // pred_check_branch
        %209 = sbr.rel (%p206) target = $region12
      $region11: #{tpu_custom_call.1} parent=5 // pred_region
        %s210 = ssub.s32 %s20, 1
        // Predicated region
        $region13: #{tpu_custom_call.1} parent=11 // pred_check
          %p211 = pneg %p58
        $region14: #{tpu_custom_call.1} parent=11 // pred_check_branch
          %213 = sbr.rel (%p211) target = $region16
        $region15: #{tpu_custom_call.1} parent=11 // pred_region
          %s215 = ssub.s32 64, 64
          %216 = vsyncadd [#allocation3], %s215
          %s217 = smul.addr %s29, 64
          %s218 = scalar_lea.hbm %s0, %s217
          %s220 = sshll.u32 [#allocation2], 4
          %s221 = int_to_ptr.vmem [resolvable:$true] %s220
          %223 = dma.hbm_to_vmem [thread:$0]  %s218, 64, %s221, [#allocation3]
        $region16: #{tpu_custom_call.1} parent=11 // pred_fallthru
          _
        // Predicated region
        $region17: #{tpu_custom_call.1} parent=11 // pred_check
          %p224 = pneg %p84
        $region18: #{tpu_custom_call.1} parent=11 // pred_check_branch
          %226 = sbr.rel (%p224) target = $region20
        $region19: #{tpu_custom_call.1} parent=11 // pred_region
          %s228 = ssub.s32 64, 64
          %229 = vsyncadd [#allocation6], %s228
          %s230 = smul.addr %s29, 64
          %s231 = scalar_lea.hbm %s1, %s230
          %s233 = sshll.u32 [#allocation5], 4
          %s234 = int_to_ptr.vmem [resolvable:$true] %s233
          %236 = dma.hbm_to_vmem [thread:$0]  %s231, 64, %s234, [#allocation6]
        $region20: #{tpu_custom_call.1} parent=11 // pred_fallthru
          _
      $region12: #{tpu_custom_call.1} parent=5 // pred_fallthru
        _
      %p237 = scmp.lt.s32.totalorder %s20, 2
      // Predicated region
      $region21: #{tpu_custom_call.1} parent=5 // pred_check
        %p238 = pneg %p237
      $region22: #{tpu_custom_call.1} parent=5 // pred_check_branch
        %240 = sbr.rel (%p238) target = $region24
      $region23: #{tpu_custom_call.1} parent=5 // pred_region
        // Predicated region
        $region25: #{tpu_custom_call.1} parent=23 // pred_check
          %p241 = pneg %p106
        $region26: #{tpu_custom_call.1} parent=23 // pred_check_branch
          %243 = sbr.rel (%p241) target = $region28
        $region27: #{tpu_custom_call.1} parent=23 // pred_region
          %s244 = sand.u32 %s20, 1
          %s245 = scalar_lea.sflag [#allocation3], %s244
          %s246 = sand.u32 %s96, 1
          %s247 = smul.addr %s246, 16
          %s248 = scalar_lea.vmem [#allocation7], %s247
          %s249 = smul.u32 4, %s28
          %s251 = ssub.s32 256, 256
          %252 = vsyncadd %s245, %s251
          %s253 = sadd.s32 %s27, %s249
          %s254 = smul.addr %s253, 64
          %s255 = scalar_lea.hbm %s2, %s254
          %s256 = sshll.u32 %s248, 4
          %s257 = int_to_ptr.vmem [resolvable:$true] %s256
          %262 = dma.hbm_to_vmem [thread:$0]  %s255, 256, %s257, %s245, 64, 64, 4
        $region28: #{tpu_custom_call.1} parent=23 // pred_fallthru
          _
        // Predicated region
        $region29: #{tpu_custom_call.1} parent=23 // pred_check
          %p263 = pneg %p134
        $region30: #{tpu_custom_call.1} parent=23 // pred_check_branch
          %265 = sbr.rel (%p263) target = $region32
        $region31: #{tpu_custom_call.1} parent=23 // pred_region
          %s266 = sand.u32 %s20, 1
          %s267 = scalar_lea.sflag [#allocation3], %s266
          %s268 = sand.u32 %s124, 1
          %s269 = smul.addr %s268, 16
          %s270 = scalar_lea.vmem [#allocation8], %s269
          %s271 = smul.u32 4, %s28
          %s273 = ssub.s32 256, 256
          %274 = vsyncadd %s267, %s273
          %s275 = sadd.s32 %s27, %s271
          %s276 = smul.addr %s275, 64
          %s277 = scalar_lea.hbm %s3, %s276
          %s278 = sshll.u32 %s270, 4
          %s279 = int_to_ptr.vmem [resolvable:$true] %s278
          %284 = dma.hbm_to_vmem [thread:$0]  %s277, 256, %s279, %s267, 64, 64, 4
        $region32: #{tpu_custom_call.1} parent=23 // pred_fallthru
          _
      $region24: #{tpu_custom_call.1} parent=5 // pred_fallthru
        _
      %p285 = scmp.le.s32.totalorder 1, %s20
      %p286 = scmp.lt.s32.totalorder %s20, 3
      %p287 = pnand %p285, %p286
      %p288 = pneg %p287
      // Predicated region
      $region33: #{tpu_custom_call.1} parent=5 // pred_check
        _
      $region34: #{tpu_custom_call.1} parent=5 // pred_check_branch
        %290 = sbr.rel (%p287) target = $region36
      $region35: #{tpu_custom_call.1} parent=5 // pred_region
        %s291 = ssub.s32 %s20, 1
        // Predicated region
        $region37: #{tpu_custom_call.1} parent=35 // pred_check
          %p292 = pneg %p58
        $region38: #{tpu_custom_call.1} parent=35 // pred_check_branch
          %294 = sbr.rel (%p292) target = $region40
        $region39: #{tpu_custom_call.1} parent=35 // pred_region
          %295 = dma.done [#allocation3], 64
        $region40: #{tpu_custom_call.1} parent=35 // pred_fallthru
          _
        // Predicated region
        $region41: #{tpu_custom_call.1} parent=35 // pred_check
          %p296 = pneg %p84
        $region42: #{tpu_custom_call.1} parent=35 // pred_check_branch
          %298 = sbr.rel (%p296) target = $region44
        $region43: #{tpu_custom_call.1} parent=35 // pred_region
          %299 = dma.done [#allocation6], 64
        $region44: #{tpu_custom_call.1} parent=35 // pred_fallthru
          _
        %s300 = sand.u32 %s25, 1
        %s301 = scalar_lea.sflag [#allocation3], %s300
        %s302 = sand.u32 %s99, 1
        %s303 = smul.addr %s302, 16
        %s304 = scalar_lea.vmem [#allocation7], %s303
        // Predicated region
        $region45: #{tpu_custom_call.1} parent=35 // pred_check
          %p305 = pneg %p112
        $region46: #{tpu_custom_call.1} parent=35 // pred_check_branch
          %307 = sbr.rel (%p305) target = $region48
        $region47: #{tpu_custom_call.1} parent=35 // pred_region
          %308 = dma.done %s301, 256
        $region48: #{tpu_custom_call.1} parent=35 // pred_fallthru
          _
        %s309 = sand.u32 %s25, 1
        %s310 = scalar_lea.sflag [#allocation3], %s309
        %s311 = sand.u32 %s127, 1
        %s312 = smul.addr %s311, 16
        %s313 = scalar_lea.vmem [#allocation8], %s312
        // Predicated region
        $region49: #{tpu_custom_call.1} parent=35 // pred_check
          %p314 = pneg %p140
        $region50: #{tpu_custom_call.1} parent=35 // pred_check_branch
          %316 = sbr.rel (%p314) target = $region52
        $region51: #{tpu_custom_call.1} parent=35 // pred_region
          %317 = dma.done %s310, 256
        $region52: #{tpu_custom_call.1} parent=35 // pred_fallthru
          _
        %p318 = pneg %p58
        %p319 = pneg %p55
        %p320 = pneg %p84
        %p321 = pneg %p81
        %s322 = sand.u32 %s25, 1
        %s323 = scalar_lea.sflag [#allocation3], %s322
        %s324 = sand.u32 %s99, 1
        %s325 = smul.addr %s324, 16
        %s326 = scalar_lea.vmem [#allocation7], %s325
        %p327 = pneg %p112
        %p328 = pneg %p109
        %s329 = sand.u32 %s25, 1
        %s330 = scalar_lea.sflag [#allocation3], %s329
        %s331 = sand.u32 %s127, 1
        %s332 = smul.addr %s331, 16
        %s333 = scalar_lea.vmem [#allocation8], %s332
        %p334 = pneg %p140
        %p335 = pneg %p137
        %p336 = pneg %p168
        %p337 = pneg %p165
        %s338 = sand.u32 %s155, 1
        %s339 = scalar_lea.sflag [#allocation4], %s338
        %s340 = sand.u32 %s155, 1
        %s341 = smul.addr %s340, 16
        %s342 = scalar_lea.vmem [#allocation9], %s341
        %p343 = pneg %p196
        %p344 = pneg %p193
        %s345 = sand.u32 %s183, 1
        %s346 = scalar_lea.sflag [#allocation11], %s345
        %s347 = sand.u32 %s183, 1
        %s348 = smul.addr %s347, 16
        %s349 = scalar_lea.vmem [#allocation10], %s348
        %s350 = smul.u32 4, %s30
        %s351 = smul.u32 4, %s30
        %s352 = smul.u32 4, %s30
        %s353 = smul.u32 4, %s30
        %v354 = vld [vmem:[#allocation2] sm:$0xf]
        %v355 = vld [vmem:[#allocation5] sm:$0xf]
        %v356 = vlaneseq
        %v357 = vand.u32 %v356, 127
        %vm358 = vcmp.lt.s32.totalorder %v357, 0
        %v359 = vsub.s32 0, %v357
        %v360 = vsel %vm358, %v359, %v357
        %v361 = vshrl.u32 %v360, 6
        %v362 = vand.u32 %v360, 63
        %v363 = vsub.s32 0, %v362
        %v364 = vsel %vm358, %v363, %v362
        %vm365 = vcmp.ne.s32.totalorder %v364, 0
        %vm366 = vcmp.lt.s32.totalorder %v364, 0
        %vm367 = vmand %vm366, %vm365
        %v368 = vadd.s32 %v364, 64
        %v369 = vsel %vm367, %v368, %v364
        %vm370 = vcmp.lt.s32.totalorder %v369, 32
        %v371 = vld [vmem:[%s304] sm:$0xf]
        %v372 = vld [vmem:[%s313] sm:$0xf]
        %v373 = vmul.f32 %v371, %v354
        %374 = vrot.lane.b32.xlu0 %v371, 96
        %v375 = vpop.permute.xlu0 %374
        %376 = vrot.lane.b32.xlu0 %v371, 32
        %v377 = vpop.permute.xlu0 %376
        %v378 = vsel %vm370, %v375, %v377
        %v379 = vmul.f32 %v378, %v355
        %v380 = vadd.f32 %v373, %v379
        %381 = vst [vmem:[%s342] sm:$0xf] %v380
        %v382 = vmul.f32 %v372, %v354
        %383 = vrot.lane.b32.xlu0 %v372, 96
        %v384 = vpop.permute.xlu0 %383
        %385 = vrot.lane.b32.xlu0 %v372, 32
        %v386 = vpop.permute.xlu0 %385
        %v387 = vsel %vm370, %v384, %v386
        %v388 = vmul.f32 %v387, %v355
        %v389 = vadd.f32 %v382, %v388
        %390 = vst [vmem:[%s349] sm:$0xf] %v389
        %s391 = scalar_lea.vmem %s304, 4 [#allocation7]
        %v392 = vld [vmem:[%s391] sm:$0xf]
        %s393 = scalar_lea.vmem %s313, 4 [#allocation8]
        %v394 = vld [vmem:[%s393] sm:$0xf]
        %v395 = vmul.f32 %v392, %v354
        %396 = vrot.lane.b32.xlu0 %v392, 96
        %v397 = vpop.permute.xlu0 %396
        %398 = vrot.lane.b32.xlu0 %v392, 32
        %v399 = vpop.permute.xlu0 %398
        %v400 = vsel %vm370, %v397, %v399
        %v401 = vmul.f32 %v400, %v355
        %v402 = vadd.f32 %v395, %v401
        %s403 = scalar_lea.vmem %s342, 4 [#allocation9]
        %404 = vst [vmem:[%s403] sm:$0xf] %v402
        %v405 = vmul.f32 %v394, %v354
        %406 = vrot.lane.b32.xlu0 %v394, 96
        %v407 = vpop.permute.xlu0 %406
        %408 = vrot.lane.b32.xlu0 %v394, 32
        %v409 = vpop.permute.xlu0 %408
        %v410 = vsel %vm370, %v407, %v409
        %v411 = vmul.f32 %v410, %v355
        %v412 = vadd.f32 %v405, %v411
        %s413 = scalar_lea.vmem %s349, 4 [#allocation10]
        %414 = vst [vmem:[%s413] sm:$0xf] %v412
        %s415 = scalar_lea.vmem %s304, 8 [#allocation7]
        %v416 = vld [vmem:[%s415] sm:$0xf]
        %s417 = scalar_lea.vmem %s313, 8 [#allocation8]
        %v418 = vld [vmem:[%s417] sm:$0xf]
        %v419 = vmul.f32 %v416, %v354
        %420 = vrot.lane.b32.xlu0 %v416, 96
        %v421 = vpop.permute.xlu0 %420
        %422 = vrot.lane.b32.xlu0 %v416, 32
        %v423 = vpop.permute.xlu0 %422
        %v424 = vsel %vm370, %v421, %v423
        %v425 = vmul.f32 %v424, %v355
        %v426 = vadd.f32 %v419, %v425
        %s427 = scalar_lea.vmem %s342, 8 [#allocation9]
        %428 = vst [vmem:[%s427] sm:$0xf] %v426
        %v429 = vmul.f32 %v418, %v354
        %430 = vrot.lane.b32.xlu0 %v418, 96
        %v431 = vpop.permute.xlu0 %430
        %432 = vrot.lane.b32.xlu0 %v418, 32
        %v433 = vpop.permute.xlu0 %432
        %v434 = vsel %vm370, %v431, %v433
        %v435 = vmul.f32 %v434, %v355
        %v436 = vadd.f32 %v429, %v435
        %s437 = scalar_lea.vmem %s349, 8 [#allocation10]
        %438 = vst [vmem:[%s437] sm:$0xf] %v436
        %s439 = scalar_lea.vmem %s304, 12 [#allocation7]
        %v440 = vld [vmem:[%s439] sm:$0xf]
        %s441 = scalar_lea.vmem %s313, 12 [#allocation8]
        %v442 = vld [vmem:[%s441] sm:$0xf]
        %v443 = vmul.f32 %v440, %v354
        %444 = vrot.lane.b32.xlu0 %v440, 96
        %v445 = vpop.permute.xlu0 %444
        %446 = vrot.lane.b32.xlu0 %v440, 32
        %v447 = vpop.permute.xlu0 %446
        %v448 = vsel %vm370, %v445, %v447
        %v449 = vmul.f32 %v448, %v355
        %v450 = vadd.f32 %v443, %v449
        %s451 = scalar_lea.vmem %s342, 12 [#allocation9]
        %452 = vst [vmem:[%s451] sm:$0xf] %v450
        %v453 = vmul.f32 %v442, %v354
        %454 = vrot.lane.b32.xlu0 %v442, 96
        %v455 = vpop.permute.xlu0 %454
        %456 = vrot.lane.b32.xlu0 %v442, 32
        %v457 = vpop.permute.xlu0 %456
        %v458 = vsel %vm370, %v455, %v457
        %v459 = vmul.f32 %v458, %v355
        %v460 = vadd.f32 %v453, %v459
        %s461 = scalar_lea.vmem %s349, 12 [#allocation10]
        %462 = vst [vmem:[%s461] sm:$0xf] %v460
        %s463 = sand.u32 %s155, 1
        %s464 = scalar_lea.sflag [#allocation4], %s463
        %s465 = sand.u32 %s155, 1
        %s466 = smul.addr %s465, 16
        %s467 = scalar_lea.vmem [#allocation9], %s466
        %s468 = sand.u32 %s183, 1
        %s469 = scalar_lea.sflag [#allocation11], %s468
        %s470 = sand.u32 %s183, 1
        %s471 = smul.addr %s470, 16
        %s472 = scalar_lea.vmem [#allocation10], %s471
        // Predicated region
        $region53: #{tpu_custom_call.1} parent=35 // pred_check
          %p473 = pneg %p165
        $region54: #{tpu_custom_call.1} parent=35 // pred_check_branch
          %475 = sbr.rel (%p473) target = $region56
        $region55: #{tpu_custom_call.1} parent=35 // pred_region
          %s476 = smul.u32 4, %s30
          %s478 = ssub.s32 256, 256
          %479 = vsyncadd %s464, %s478
          %s480 = sadd.s32 %s29, %s476
          %s481 = smul.addr %s480, 64
          %s482 = scalar_lea.hbm %s4, %s481
          %s483 = sshll.u32 %s467, 4
          %s484 = int_to_ptr.vmem [resolvable:$true] %s483
          %489 = dma.vmem_to_hbm [thread:$0]  %s484, 256, %s482, %s464, 64, 64, 4
        $region56: #{tpu_custom_call.1} parent=35 // pred_fallthru
          _
        // Predicated region
        $region57: #{tpu_custom_call.1} parent=35 // pred_check
          %p490 = pneg %p193
        $region58: #{tpu_custom_call.1} parent=35 // pred_check_branch
          %492 = sbr.rel (%p490) target = $region60
        $region59: #{tpu_custom_call.1} parent=35 // pred_region
          %s493 = smul.u32 4, %s30
          %s495 = ssub.s32 256, 256
          %496 = vsyncadd %s469, %s495
          %s497 = sadd.s32 %s29, %s493
          %s498 = smul.addr %s497, 64
          %s499 = scalar_lea.hbm %s5, %s498
          %s500 = sshll.u32 %s472, 4
          %s501 = int_to_ptr.vmem [resolvable:$true] %s500
          %506 = dma.vmem_to_hbm [thread:$0]  %s501, 256, %s499, %s469, 64, 64, 4
        $region60: #{tpu_custom_call.1} parent=35 // pred_fallthru
          _
      $region36: #{tpu_custom_call.1} parent=5 // pred_fallthru
        _
      %p507 = scmp.le.s32.totalorder 2, %s20
      // Predicated region
      $region61: #{tpu_custom_call.1} parent=5 // pred_check
        %p508 = pneg %p507
      $region62: #{tpu_custom_call.1} parent=5 // pred_check_branch
        %510 = sbr.rel (%p508) target = $region64
      $region63: #{tpu_custom_call.1} parent=5 // pred_region
        %s511 = ssub.s32 %s20, 2
        // Predicated region
        $region65: #{tpu_custom_call.1} parent=63 // pred_check
          %p512 = pneg %p171
        $region66: #{tpu_custom_call.1} parent=63 // pred_check_branch
          %514 = sbr.rel (%p512) target = $region68
        $region67: #{tpu_custom_call.1} parent=63 // pred_region
          %s515 = sand.u32 %s156, 1
          %s516 = scalar_lea.sflag [#allocation4], %s515
          %s517 = sand.u32 %s156, 1
          %s518 = smul.addr %s517, 16
          %s519 = scalar_lea.vmem [#allocation9], %s518
          %520 = dma.done %s516, 256
        $region68: #{tpu_custom_call.1} parent=63 // pred_fallthru
          _
        // Predicated region
        $region69: #{tpu_custom_call.1} parent=63 // pred_check
          %p521 = pneg %p199
        $region70: #{tpu_custom_call.1} parent=63 // pred_check_branch
          %523 = sbr.rel (%p521) target = $region72
        $region71: #{tpu_custom_call.1} parent=63 // pred_region
          %s524 = sand.u32 %s184, 1
          %s525 = scalar_lea.sflag [#allocation11], %s524
          %s526 = sand.u32 %s184, 1
          %s527 = smul.addr %s526, 16
          %s528 = scalar_lea.vmem [#allocation10], %s527
          %529 = dma.done %s525, 256
        $region72: #{tpu_custom_call.1} parent=63 // pred_fallthru
          _
      $region64: #{tpu_custom_call.1} parent=5 // pred_fallthru
        _
    $region6: #{tpu_custom_call.1} parent=1 // loop_footer
      %s24 = sadd.s32 1, %s20
    $region7: #{tpu_custom_call.1} parent=1 // loop_footer_branch
      %19 = sbr.rel target = $region3
    $region8: #{tpu_custom_call.1} parent=1 // loop_exit
      _
    %530 = vsyncpa [#allocation3], 1
    %s531 = scalar_lea.sflag [#allocation3], 1
    %532 = vsyncpa %s531, 1
    %533 = vsyncpa [#allocation6], 1
    %534 = vsyncpa [#allocation4], 1
    %s535 = scalar_lea.sflag [#allocation4], 1
    %536 = vsyncpa %s535, 1
    %537 = vsyncpa [#allocation11], 1
    %s538 = scalar_lea.sflag [#allocation11], 1
    %539 = vsyncpa %s538, 1

</llo_original>
